<compile_context>
chip_gen: v5e
topology: v5e:2x2
jax: 0.10.0
libtpu: 0.0.40
codegen_flags: <defaults>
</compile_context>

<pallas_src>
import jax
import jax.numpy as jnp
from jax.experimental import pallas as pl
from jax.experimental.pallas import tpu as pltpu

HIDDEN = (256, 256, 256, 100)
H3_PAD = 128      # layer-4 width 100 padded up to a lane-dense 128
OUT_PAD = 128     # output width padded up to 128 for the final MXU pass
BIAS_LANES = 256  # all biases packed into one [5, 256] array


def _mlp_kernel(x_ref, w1_ref, w2_ref, w3_ref, w4_ref, w5_ref, b_ref, out_ref):
    f32 = jnp.float32
    bf16 = jnp.bfloat16
    b = b_ref[...]  # [5, 256] f32, VMEM-resident across the whole grid

    # x arrives f32; cast to bf16 in-kernel (cheap VPU op, hidden under MXU).
    x = x_ref[...].astype(bf16)

    h = jnp.dot(x, w1_ref[...], preferred_element_type=f32) + b[0, :]
    h = jnp.maximum(h, 0.0).astype(bf16)

    h = jnp.dot(h, w2_ref[...], preferred_element_type=f32) + b[1, :]
    h = jnp.maximum(h, 0.0).astype(bf16)

    h = jnp.dot(h, w3_ref[...], preferred_element_type=f32) + b[2, :]
    h = jnp.maximum(h, 0.0).astype(bf16)

    h = jnp.dot(h, w4_ref[...], preferred_element_type=f32) + b[3, :H3_PAD]
    h = jnp.maximum(h, 0.0).astype(bf16)

    y = jnp.dot(h, w5_ref[...], preferred_element_type=f32) + b[4, :OUT_PAD]
    # Store only the real output columns (narrow masked store is trivial vs.
    # the 64x padded-f32 HBM write it replaces).
    out_ref[...] = y[:, : out_ref.shape[1]].astype(out_ref.dtype)


def prepack_params(params):
    """One-time packing: bf16 weights, 100->128 zero-pads, [5,256] bias pack.

    Call once at init; pass the result to heart_model_large_forward.
    Zero-padding is exact: padded columns get ReLU(0)=0 and multiply zero
    rows of the next (zero-padded) weight.
    """
    (w1, b1), (w2, b2), (w3, b3), (w4, b4), (w5, b5) = params
    bf16 = jnp.bfloat16

    w1b = w1.astype(bf16)
    w2b = w2.astype(bf16)
    w3b = w3.astype(bf16)
    w4b = jnp.zeros((w4.shape[0], H3_PAD), bf16).at[:, : w4.shape[1]].set(
        w4.astype(bf16))
    w5b = jnp.zeros((H3_PAD, OUT_PAD), bf16).at[: w5.shape[0], : w5.shape[1]].set(
        w5.astype(bf16))

    def pad_bias(bv):
        flat = bv.reshape(-1).astype(jnp.float32)
        return jnp.zeros((BIAS_LANES,), jnp.float32).at[: flat.shape[0]].set(flat)

    bias_pack = jnp.stack(
        [pad_bias(b1), pad_bias(b2), pad_bias(b3), pad_bias(b4), pad_bias(b5)],
        axis=0)  # [5, 256] f32

    output_size = int(w5.shape[1])
    return dict(w1=w1b, w2=w2b, w3=w3b, w4=w4b, w5=w5b,
                bias=bias_pack, output_size=output_size)


def _round_up(v, m):
    return ((v + m - 1) // m) * m


def _choose_tb(batch, block_batch):
    """Batch tile: multiple of 16 sublanes, >=2 blocks for megacore sharding."""
    if batch <= 16:
        return batch
    tb = _round_up(pl.cdiv(batch, 2), 16)   # at least 2 grid steps
    return max(16, min(tb, block_batch))


def heart_model_large_forward(x, packed, *, block_batch=2048):
    """x: [batch, input_size] float32. packed: output of prepack_params()."""
    batch, input_size = x.shape
    output_size = packed["output_size"]
    w1b, w2b, w3b, w4b, w5b = (packed["w1"], packed["w2"], packed["w3"],
                               packed["w4"], packed["w5"])
    bias_pack = packed["bias"]

    tb = _choose_tb(batch, block_batch)
    grid = (pl.cdiv(batch, tb),)

    dims = [input_size, *HIDDEN, output_size]
    flops = 2 * batch * sum(dims[i] * dims[i + 1] for i in range(len(dims) - 1))
    weight_bytes = sum(int(w.size) * 2 for w in (w1b, w2b, w3b, w4b, w5b))
    bytes_accessed = (batch * input_size * 4 + weight_bytes
                      + int(bias_pack.size) * 4 + batch * output_size * 4)

    out = pl.pallas_call(
        _mlp_kernel,
        out_shape=jax.ShapeDtypeStruct((batch, output_size), jnp.float32),
        grid=grid,
        in_specs=[
            pl.BlockSpec((tb, input_size), lambda i: (i, 0)),
            pl.BlockSpec(w1b.shape, lambda i: (0, 0)),
            pl.BlockSpec(w2b.shape, lambda i: (0, 0)),
            pl.BlockSpec(w3b.shape, lambda i: (0, 0)),
            pl.BlockSpec(w4b.shape, lambda i: (0, 0)),
            pl.BlockSpec(w5b.shape, lambda i: (0, 0)),
            pl.BlockSpec(bias_pack.shape, lambda i: (0, 0)),
        ],
        out_specs=pl.BlockSpec((tb, output_size), lambda i: (i, 0)),
        compiler_params=pltpu.CompilerParams(
            dimension_semantics=("parallel",)),
        cost_estimate=pl.CostEstimate(
            flops=flops, transcendentals=0, bytes_accessed=bytes_accessed),
    )(x, w1b, w2b, w3b, w4b, w5b, bias_pack)

    return out


def init_params(key, input_size, output_size):
    """Deterministic init matching nn.Linear's U(-1/sqrt(fan_in), 1/sqrt(fan_in))."""
    dims = [input_size, *HIDDEN, output_size]
    params = []
    for i in range(len(dims) - 1):
        fan_in, fan_out = dims[i], dims[i + 1]
        key, kw, kb = jax.random.split(key, 3)
        bound = 1.0 / jnp.sqrt(jnp.float32(fan_in))
        # Stored as [in, out] (transposed vs. PyTorch's [out, in]).
        w = jax.random.uniform(kw, (fan_in, fan_out), jnp.float32, -bound, bound)
        b = jax.random.uniform(kb, (1, fan_out), jnp.float32, -bound, bound)
        params.append((w, b))
    return params


def reference_forward_bf16(x, params):
    """Mirrors the kernel's numerics: bf16 inputs/weights, f32 accumulation."""
    h = x.astype(jnp.bfloat16)
    n = len(params)
    for i, (w, b) in enumerate(params):
        h = jnp.dot(h, w.astype(jnp.bfloat16),
                    preferred_element_type=jnp.float32) + b[0]
        if i < n - 1:
            h = jnp.maximum(h, 0.0).astype(jnp.bfloat16)
    return h


def reference_forward_f32(x, params):
    """Pure-f32 semantics of the original PyTorch module."""
    h = x
    n = len(params)
    for i, (w, b) in enumerate(params):
        h = h @ w + b
        if i < n - 1:
            h = jnp.maximum(h, 0.0)
    return h


def _check(out, x, params):
    ref_bf16 = reference_forward_bf16(x, params)
    assert jnp.allclose(out, ref_bf16, atol=1e-2, rtol=1e-2), \
        "mismatch vs. bf16-mirrored reference"
    # NOTE: weights/activations are bf16-quantized, so results deviate slightly
    # from the f32 PyTorch module; checked here at loose tolerance.
    ref_f32 = reference_forward_f32(x, params)
    assert jnp.allclose(out, ref_f32, atol=1e-1, rtol=1e-1), \
        "drifted from f32 reference"


if __name__ == "__main__":
    key = jax.random.PRNGKey(0)
    input_size = 13   # heart-disease style feature count
    output_size = 2

    k_x, k_p, k_x2 = jax.random.split(key, 3)
    params = init_params(k_p, input_size, output_size)
    packed = prepack_params(params)   # one-time packing, outside the fwd path

    # Primary small test.
    batch = 8
    x = jax.random.normal(k_x, (batch, input_size), jnp.float32)
    out = jax.block_until_ready(heart_model_large_forward(x, packed))
    assert out.shape == (batch, output_size)
    _check(out, x, params)

    # Non-divisible batch: 2 grid blocks (tb=16), last block partial.
    batch2 = 24
    x2 = jax.random.normal(k_x2, (batch2, input_size), jnp.float32)
    out2 = jax.block_until_ready(heart_model_large_forward(x2, packed))
    assert out2.shape == (batch2, output_size)
    _check(out2, x2, params)

    print("KERNEL_OK")
</pallas_src>

<mosaic_0001>
module attributes {stable_mosaic.version = 11 : i64} {
  func.func @_mlp_kernel(%arg0: i32, %arg1: memref<8x13xf32, #tpu.memory_space<vmem>>, %arg2: memref<13x256xbf16, #tpu.memory_space<vmem>>, %arg3: memref<256x256xbf16, #tpu.memory_space<vmem>>, %arg4: memref<256x256xbf16, #tpu.memory_space<vmem>>, %arg5: memref<256x128xbf16, #tpu.memory_space<vmem>>, %arg6: memref<128x128xbf16, #tpu.memory_space<vmem>>, %arg7: memref<5x256xf32, #tpu.memory_space<vmem>>, %arg8: memref<8x2xf32, #tpu.memory_space<vmem>>) attributes {dimension_semantics = [#tpu.dimension_semantics<parallel>], iteration_bounds = array<i64: 1>, scalar_prefetch = 0 : i64, scratch_operands = 0 : i64, tpu.core_type = #tpu.core_type<tc>, window_params = [{transform_indices = @transform_0, window_bounds = array<i64: 8, 13>}, {pipeline_mode = #tpu.pipeline_mode<synchronous>, transform_indices = @transform_1, window_bounds = array<i64: 13, 256>}, {pipeline_mode = #tpu.pipeline_mode<synchronous>, transform_indices = @transform_2, window_bounds = array<i64: 256, 256>}, {pipeline_mode = #tpu.pipeline_mode<synchronous>, transform_indices = @transform_3, window_bounds = array<i64: 256, 256>}, {pipeline_mode = #tpu.pipeline_mode<synchronous>, transform_indices = @transform_4, window_bounds = array<i64: 256, 128>}, {pipeline_mode = #tpu.pipeline_mode<synchronous>, transform_indices = @transform_5, window_bounds = array<i64: 128, 128>}, {pipeline_mode = #tpu.pipeline_mode<synchronous>, transform_indices = @transform_6, window_bounds = array<i64: 5, 256>}, {transform_indices = @transform_7, window_bounds = array<i64: 8, 2>}]} {
    %c0 = arith.constant 0 : index
    %c0_0 = arith.constant 0 : index
    %0 = vector.load %arg7[%c0, %c0_0] : memref<5x256xf32, #tpu.memory_space<vmem>>, vector<5x256xf32>
    %c0_1 = arith.constant 0 : index
    %c0_2 = arith.constant 0 : index
    %1 = vector.load %arg1[%c0_1, %c0_2] : memref<8x13xf32, #tpu.memory_space<vmem>>, vector<8x13xf32>
    %2 = arith.truncf %1 : vector<8x13xf32> to vector<8x13xbf16>
    %c0_3 = arith.constant 0 : index
    %c0_4 = arith.constant 0 : index
    %3 = vector.load %arg2[%c0_3, %c0_4] : memref<13x256xbf16, #tpu.memory_space<vmem>>, vector<13x256xbf16>
    %cst = arith.constant dense<0.000000e+00> : vector<8x256xf32>
    %4 = tpu.matmul %2, %3, %cst {dimension_numbers = #tpu.dot_dimension_numbers<[1], [0], [0], [1], [0, 0, 1, 1], [], []>} : vector<8x13xbf16>, vector<13x256xbf16>, vector<8x256xf32> -> vector<8x256xf32>
    %5 = vector.extract_strided_slice %0 {offsets = [0, 0], sizes = [1, 256], strides = [1, 1]} : vector<5x256xf32> to vector<1x256xf32>
    %6 = vector.shape_cast %5 : vector<1x256xf32> to vector<256xf32>
    %7 = vector.shape_cast %6 : vector<256xf32> to vector<1x256xf32>
    %8 = vector.broadcast %7 : vector<1x256xf32> to vector<8x256xf32>
    %9 = arith.addf %4, %8 : vector<8x256xf32>
    %cst_5 = arith.constant 0.000000e+00 : f32
    %10 = vector.broadcast %cst_5 : f32 to vector<8x256xf32>
    %11 = arith.maximumf %9, %10 : vector<8x256xf32>
    %12 = arith.truncf %11 : vector<8x256xf32> to vector<8x256xbf16>
    %c0_6 = arith.constant 0 : index
    %c0_7 = arith.constant 0 : index
    %13 = vector.load %arg3[%c0_6, %c0_7] : memref<256x256xbf16, #tpu.memory_space<vmem>>, vector<256x256xbf16>
    %cst_8 = arith.constant dense<0.000000e+00> : vector<8x256xf32>
    %14 = tpu.matmul %12, %13, %cst_8 {dimension_numbers = #tpu.dot_dimension_numbers<[1], [0], [0], [1], [0, 0, 1, 1], [], []>} : vector<8x256xbf16>, vector<256x256xbf16>, vector<8x256xf32> -> vector<8x256xf32>
    %15 = vector.extract_strided_slice %0 {offsets = [1, 0], sizes = [1, 256], strides = [1, 1]} : vector<5x256xf32> to vector<1x256xf32>
    %16 = vector.shape_cast %15 : vector<1x256xf32> to vector<256xf32>
    %17 = vector.shape_cast %16 : vector<256xf32> to vector<1x256xf32>
    %18 = vector.broadcast %17 : vector<1x256xf32> to vector<8x256xf32>
    %19 = arith.addf %14, %18 : vector<8x256xf32>
    %cst_9 = arith.constant 0.000000e+00 : f32
    %20 = vector.broadcast %cst_9 : f32 to vector<8x256xf32>
    %21 = arith.maximumf %19, %20 : vector<8x256xf32>
    %22 = arith.truncf %21 : vector<8x256xf32> to vector<8x256xbf16>
    %c0_10 = arith.constant 0 : index
    %c0_11 = arith.constant 0 : index
    %23 = vector.load %arg4[%c0_10, %c0_11] : memref<256x256xbf16, #tpu.memory_space<vmem>>, vector<256x256xbf16>
    %cst_12 = arith.constant dense<0.000000e+00> : vector<8x256xf32>
    %24 = tpu.matmul %22, %23, %cst_12 {dimension_numbers = #tpu.dot_dimension_numbers<[1], [0], [0], [1], [0, 0, 1, 1], [], []>} : vector<8x256xbf16>, vector<256x256xbf16>, vector<8x256xf32> -> vector<8x256xf32>
    %25 = vector.extract_strided_slice %0 {offsets = [2, 0], sizes = [1, 256], strides = [1, 1]} : vector<5x256xf32> to vector<1x256xf32>
    %26 = vector.shape_cast %25 : vector<1x256xf32> to vector<256xf32>
    %27 = vector.shape_cast %26 : vector<256xf32> to vector<1x256xf32>
    %28 = vector.broadcast %27 : vector<1x256xf32> to vector<8x256xf32>
    %29 = arith.addf %24, %28 : vector<8x256xf32>
    %cst_13 = arith.constant 0.000000e+00 : f32
    %30 = vector.broadcast %cst_13 : f32 to vector<8x256xf32>
    %31 = arith.maximumf %29, %30 : vector<8x256xf32>
    %32 = arith.truncf %31 : vector<8x256xf32> to vector<8x256xbf16>
    %c0_14 = arith.constant 0 : index
    %c0_15 = arith.constant 0 : index
    %33 = vector.load %arg5[%c0_14, %c0_15] : memref<256x128xbf16, #tpu.memory_space<vmem>>, vector<256x128xbf16>
    %cst_16 = arith.constant dense<0.000000e+00> : vector<8x128xf32>
    %34 = tpu.matmul %32, %33, %cst_16 {dimension_numbers = #tpu.dot_dimension_numbers<[1], [0], [0], [1], [0, 0, 1, 1], [], []>} : vector<8x256xbf16>, vector<256x128xbf16>, vector<8x128xf32> -> vector<8x128xf32>
    %35 = vector.extract_strided_slice %0 {offsets = [3, 0], sizes = [1, 128], strides = [1, 1]} : vector<5x256xf32> to vector<1x128xf32>
    %36 = vector.shape_cast %35 : vector<1x128xf32> to vector<128xf32>
    %37 = vector.shape_cast %36 : vector<128xf32> to vector<1x128xf32>
    %38 = vector.broadcast %37 : vector<1x128xf32> to vector<8x128xf32>
    %39 = arith.addf %34, %38 : vector<8x128xf32>
    %cst_17 = arith.constant 0.000000e+00 : f32
    %40 = vector.broadcast %cst_17 : f32 to vector<8x128xf32>
    %41 = arith.maximumf %39, %40 : vector<8x128xf32>
    %42 = arith.truncf %41 : vector<8x128xf32> to vector<8x128xbf16>
    %c0_18 = arith.constant 0 : index
    %c0_19 = arith.constant 0 : index
    %43 = vector.load %arg6[%c0_18, %c0_19] : memref<128x128xbf16, #tpu.memory_space<vmem>>, vector<128x128xbf16>
    %cst_20 = arith.constant dense<0.000000e+00> : vector<8x128xf32>
    %44 = tpu.matmul %42, %43, %cst_20 {dimension_numbers = #tpu.dot_dimension_numbers<[1], [0], [0], [1], [0, 0, 1, 1], [], []>} : vector<8x128xbf16>, vector<128x128xbf16>, vector<8x128xf32> -> vector<8x128xf32>
    %45 = vector.extract_strided_slice %0 {offsets = [4, 0], sizes = [1, 128], strides = [1, 1]} : vector<5x256xf32> to vector<1x128xf32>
    %46 = vector.shape_cast %45 : vector<1x128xf32> to vector<128xf32>
    %47 = vector.shape_cast %46 : vector<128xf32> to vector<1x128xf32>
    %48 = vector.broadcast %47 : vector<1x128xf32> to vector<8x128xf32>
    %49 = arith.addf %44, %48 : vector<8x128xf32>
    %50 = vector.extract_strided_slice %49 {offsets = [0, 0], sizes = [8, 2], strides = [1, 1]} : vector<8x128xf32> to vector<8x2xf32>
    %c0_21 = arith.constant 0 : index
    %c0_22 = arith.constant 0 : index
    %51 = vector.load %arg8[%c0_21, %c0_22] : memref<8x2xf32, #tpu.memory_space<vmem>>, vector<8x2xf32>
    tpu.vector_store %arg8[%c0_21, %c0_22], %50 {strides = array<i32>} : memref<8x2xf32, #tpu.memory_space<vmem>>, vector<8x2xf32>,
    return
  }
  func.func @transform_0(%arg0: i32) -> (i32, i32) {
    %c0_i32 = arith.constant 0 : i32
    %c0_i32_0 = arith.constant 0 : i32
    return %arg0, %c0_i32 : i32, i32
  }
  func.func @transform_1(%arg0: i32) -> (i32, i32) {
    %c0_i32 = arith.constant 0 : i32
    %c0_i32_0 = arith.constant 0 : i32
    %c0_i32_1 = arith.constant 0 : i32
    return %c0_i32, %c0_i32_0 : i32, i32
  }
  func.func @transform_2(%arg0: i32) -> (i32, i32) {
    %c0_i32 = arith.constant 0 : i32
    %c0_i32_0 = arith.constant 0 : i32
    %c0_i32_1 = arith.constant 0 : i32
    return %c0_i32, %c0_i32_0 : i32, i32
  }
  func.func @transform_3(%arg0: i32) -> (i32, i32) {
    %c0_i32 = arith.constant 0 : i32
    %c0_i32_0 = arith.constant 0 : i32
    %c0_i32_1 = arith.constant 0 : i32
    return %c0_i32, %c0_i32_0 : i32, i32
  }
  func.func @transform_4(%arg0: i32) -> (i32, i32) {
    %c0_i32 = arith.constant 0 : i32
    %c0_i32_0 = arith.constant 0 : i32
    %c0_i32_1 = arith.constant 0 : i32
    return %c0_i32, %c0_i32_0 : i32, i32
  }
  func.func @transform_5(%arg0: i32) -> (i32, i32) {
    %c0_i32 = arith.constant 0 : i32
    %c0_i32_0 = arith.constant 0 : i32
    %c0_i32_1 = arith.constant 0 : i32
    return %c0_i32, %c0_i32_0 : i32, i32
  }
  func.func @transform_6(%arg0: i32) -> (i32, i32) {
    %c0_i32 = arith.constant 0 : i32
    %c0_i32_0 = arith.constant 0 : i32
    %c0_i32_1 = arith.constant 0 : i32
    return %c0_i32, %c0_i32_0 : i32, i32
  }
  func.func @transform_7(%arg0: i32) -> (i32, i32) {
    %c0_i32 = arith.constant 0 : i32
    %c0_i32_0 = arith.constant 0 : i32
    return %arg0, %c0_i32 : i32, i32
  }
}

</mosaic_0001>

<llo_original>
// kernel: tpu_custom_call.1
$region0: #{tpu_custom_call.1}
  #allocation0 [shape = 'u32[]', space=smem, size = 0x4, offset = 0x4, fixed_abs, tag = 'smem constant byte address 0x4 - core index']
  #allocation1 [shape = 'u32[72,128]{1,0:T(1,128)}', space=vmem, size = 0x9000, scoped, tag = 'internal scratch']
  %s0 = inlined_call_operand.hbm [shape: f32[8,13], index: 0, kind: input, shape index: {}]
  %s1 = inlined_call_operand.hbm [shape: bf16[13,256], index: 1, kind: input, shape index: {}]
  %s2 = inlined_call_operand.hbm [shape: bf16[256,256], index: 2, kind: input, shape index: {}]
  %s3 = inlined_call_operand.hbm [shape: bf16[256,256], index: 3, kind: input, shape index: {}]
  %s4 = inlined_call_operand.hbm [shape: bf16[256,128], index: 4, kind: input, shape index: {}]
  %s5 = inlined_call_operand.hbm [shape: bf16[128,128], index: 5, kind: input, shape index: {}]
  %s6 = inlined_call_operand.hbm [shape: f32[5,256], index: 6, kind: input, shape index: {}]
  %s7 = inlined_call_operand.vmem [shape: f32[8,2], index: 7, kind: output, shape index: {}]
  %s8 = sld [smem:[#allocation0]]
  $region66: #{tpu_custom_call.1} parent=0
    _
  %s10 = ssub.s32 1, %s8
  %s11 = scalar_select 0, %s10, %s8
  $region1: #{tpu_custom_call.1} parent=0
    #allocation2 [shape = 'u8[4096]{0}', space=vmem, size = 0x1000, scoped, tag = 'input window, operand 0, single buffered']
    #allocation3 [shape = 's32[1]{0}', space=sflag, size = 0x4, scoped, tag = 'scoped memory for tpu_custom_call.1']
    #allocation4 [shape = 'u8[8192]{0}', space=vmem, size = 0x2000, scoped, tag = 'input window, operand 1, single buffered']
    #allocation5 [shape = 's32[1]{0}', space=sflag, size = 0x4, scoped, tag = 'scoped memory for tpu_custom_call.1']
    #allocation6 [shape = 'u8[131072]{0}', space=vmem, size = 0x20000, scoped, tag = 'input window, operand 2, single buffered']
    #allocation7 [shape = 'u8[131072]{0}', space=vmem, size = 0x20000, scoped, tag = 'input window, operand 3, single buffered']
    #allocation8 [shape = 's32[1]{0}', space=sflag, size = 0x4, scoped, tag = 'scoped memory for tpu_custom_call.1']
    #allocation9 [shape = 'u8[65536]{0}', space=vmem, size = 0x10000, scoped, tag = 'input window, operand 4, single buffered']
    #allocation10 [shape = 'u8[32768]{0}', space=vmem, size = 0x8000, scoped, tag = 'input window, operand 5, single buffered']
    #allocation11 [shape = 's32[1]{0}', space=sflag, size = 0x4, scoped, tag = 'scoped memory for tpu_custom_call.1']
    #allocation12 [shape = 'u8[8192]{0}', space=vmem, size = 0x2000, scoped, tag = 'input window, operand 6, single buffered']
    %12 = vsyncpa [#allocation3], 0
    %13 = vsyncpa [#allocation5], 0
    %14 = vsyncpa [#allocation8], 0
    %15 = vsyncpa [#allocation11], 0
    // Predicated region
    $region2: #{tpu_custom_call.1} parent=1 // pred_check
      _
    $region3: #{tpu_custom_call.1} parent=1 // pred_check_branch
      %17 = sbr.rel (0) target = $region5
    $region4: #{tpu_custom_call.1} parent=1 // pred_region
      %19 = vsyncadd [#allocation3], 0
      %s21 = sshll.u32 %s0, 4
      %s22 = int_to_ptr.hbm [resolvable:$true] %s21
      %s23 = sshll.u32 [#allocation2], 4
      %s24 = int_to_ptr.vmem [resolvable:$true] %s23
      %26 = dma.hbm_to_vmem [thread:$0]  %s22, 128, %s24, [#allocation3]
    $region5: #{tpu_custom_call.1} parent=1 // pred_fallthru
      _
    // Predicated region
    $region6: #{tpu_custom_call.1} parent=1 // pred_check
      _
    $region7: #{tpu_custom_call.1} parent=1 // pred_check_branch
      %28 = sbr.rel (0) target = $region9
    $region8: #{tpu_custom_call.1} parent=1 // pred_region
      %30 = vsyncadd [#allocation5], 0
      %s31 = sshll.u32 %s1, 4
      %s32 = int_to_ptr.hbm [resolvable:$true] %s31
      %s33 = sshll.u32 [#allocation4], 4
      %s34 = int_to_ptr.vmem [resolvable:$true] %s33
      %39 = dma.hbm_to_vmem [thread:$0]  %s32, 256, %s34, [#allocation5], 128, 128, 8
    $region9: #{tpu_custom_call.1} parent=1 // pred_fallthru
      _
    // Predicated region
    $region10: #{tpu_custom_call.1} parent=1 // pred_check
      _
    $region11: #{tpu_custom_call.1} parent=1 // pred_check_branch
      %41 = sbr.rel (0) target = $region13
    $region12: #{tpu_custom_call.1} parent=1 // pred_region
      %43 = vsyncadd [#allocation5], 0
      %s44 = sshll.u32 %s2, 4
      %s45 = int_to_ptr.hbm [resolvable:$true] %s44
      %s46 = sshll.u32 [#allocation6], 4
      %s47 = int_to_ptr.vmem [resolvable:$true] %s46
      %52 = dma.hbm_to_vmem [thread:$0]  %s45, 4096, %s47, [#allocation5], 128, 128, 8
    $region13: #{tpu_custom_call.1} parent=1 // pred_fallthru
      _
    // Predicated region
    $region14: #{tpu_custom_call.1} parent=1 // pred_check
      _
    $region15: #{tpu_custom_call.1} parent=1 // pred_check_branch
      %54 = sbr.rel (0) target = $region17
    $region16: #{tpu_custom_call.1} parent=1 // pred_region
      %56 = vsyncadd [#allocation8], 0
      %s57 = sshll.u32 %s3, 4
      %s58 = int_to_ptr.hbm [resolvable:$true] %s57
      %s59 = sshll.u32 [#allocation7], 4
      %s60 = int_to_ptr.vmem [resolvable:$true] %s59
      %65 = dma.hbm_to_vmem [thread:$0]  %s58, 4096, %s60, [#allocation8], 128, 128, 8
    $region17: #{tpu_custom_call.1} parent=1 // pred_fallthru
      _
    // Predicated region
    $region18: #{tpu_custom_call.1} parent=1 // pred_check
      _
    $region19: #{tpu_custom_call.1} parent=1 // pred_check_branch
      %67 = sbr.rel (0) target = $region21
    $region20: #{tpu_custom_call.1} parent=1 // pred_region
      %69 = vsyncadd [#allocation8], 0
      %s70 = sshll.u32 %s4, 4
      %s71 = int_to_ptr.hbm [resolvable:$true] %s70
      %s72 = sshll.u32 [#allocation9], 4
      %s73 = int_to_ptr.vmem [resolvable:$true] %s72
      %78 = dma.hbm_to_vmem [thread:$0]  %s71, 2048, %s73, [#allocation8], 64, 64, 4
    $region21: #{tpu_custom_call.1} parent=1 // pred_fallthru
      _
    // Predicated region
    $region22: #{tpu_custom_call.1} parent=1 // pred_check
      _
    $region23: #{tpu_custom_call.1} parent=1 // pred_check_branch
      %80 = sbr.rel (0) target = $region25
    $region24: #{tpu_custom_call.1} parent=1 // pred_region
      %82 = vsyncadd [#allocation11], 0
      %s83 = sshll.u32 %s5, 4
      %s84 = int_to_ptr.hbm [resolvable:$true] %s83
      %s85 = sshll.u32 [#allocation10], 4
      %s86 = int_to_ptr.vmem [resolvable:$true] %s85
      %91 = dma.hbm_to_vmem [thread:$0]  %s84, 1024, %s86, [#allocation11], 64, 64, 4
    $region25: #{tpu_custom_call.1} parent=1 // pred_fallthru
      _
    // Predicated region
    $region26: #{tpu_custom_call.1} parent=1 // pred_check
      _
    $region27: #{tpu_custom_call.1} parent=1 // pred_check_branch
      %93 = sbr.rel (0) target = $region29
    $region28: #{tpu_custom_call.1} parent=1 // pred_region
      %95 = vsyncadd [#allocation11], 0
      %s97 = sshll.u32 %s6, 4
      %s98 = int_to_ptr.hbm [resolvable:$true] %s97
      %s99 = sshll.u32 [#allocation12], 4
      %s100 = int_to_ptr.vmem [resolvable:$true] %s99
      %102 = dma.hbm_to_vmem [thread:$0]  %s98, 256, %s100, [#allocation11]
    $region29: #{tpu_custom_call.1} parent=1 // pred_fallthru
      _
    // Predicated region
    $region30: #{tpu_custom_call.1} parent=1 // pred_check
      _
    $region31: #{tpu_custom_call.1} parent=1 // pred_check_branch
      %104 = sbr.rel (0) target = $region33
    $region32: #{tpu_custom_call.1} parent=1 // pred_region
      %106 = dma.done [#allocation3], 128
    $region33: #{tpu_custom_call.1} parent=1 // pred_fallthru
      _
    // Predicated region
    $region34: #{tpu_custom_call.1} parent=1 // pred_check
      _
    $region35: #{tpu_custom_call.1} parent=1 // pred_check_branch
      %108 = sbr.rel (0) target = $region37
    $region36: #{tpu_custom_call.1} parent=1 // pred_region
      %110 = dma.done [#allocation5], 256
    $region37: #{tpu_custom_call.1} parent=1 // pred_fallthru
      _
    // Predicated region
    $region38: #{tpu_custom_call.1} parent=1 // pred_check
      _
    $region39: #{tpu_custom_call.1} parent=1 // pred_check_branch
      %112 = sbr.rel (0) target = $region41
    $region40: #{tpu_custom_call.1} parent=1 // pred_region
      %114 = dma.done [#allocation5], 4096
    $region41: #{tpu_custom_call.1} parent=1 // pred_fallthru
      _
    // Predicated region
    $region42: #{tpu_custom_call.1} parent=1 // pred_check
      _
    $region43: #{tpu_custom_call.1} parent=1 // pred_check_branch
      %116 = sbr.rel (0) target = $region45
    $region44: #{tpu_custom_call.1} parent=1 // pred_region
      %118 = dma.done [#allocation8], 4096
    $region45: #{tpu_custom_call.1} parent=1 // pred_fallthru
      _
    // Predicated region
    $region46: #{tpu_custom_call.1} parent=1 // pred_check
      _
    $region47: #{tpu_custom_call.1} parent=1 // pred_check_branch
      %120 = sbr.rel (0) target = $region49
    $region48: #{tpu_custom_call.1} parent=1 // pred_region
      %122 = dma.done [#allocation8], 2048
    $region49: #{tpu_custom_call.1} parent=1 // pred_fallthru
      _
    // Predicated region
    $region50: #{tpu_custom_call.1} parent=1 // pred_check
      _
    $region51: #{tpu_custom_call.1} parent=1 // pred_check_branch
      %124 = sbr.rel (0) target = $region53
    $region52: #{tpu_custom_call.1} parent=1 // pred_region
      %126 = dma.done [#allocation11], 1024
    $region53: #{tpu_custom_call.1} parent=1 // pred_fallthru
      _
    // Predicated region
    $region54: #{tpu_custom_call.1} parent=1 // pred_check
      _
    $region55: #{tpu_custom_call.1} parent=1 // pred_check_branch
      %128 = sbr.rel (0) target = $region57
    $region56: #{tpu_custom_call.1} parent=1 // pred_region
      %130 = dma.done [#allocation11], 256
    $region57: #{tpu_custom_call.1} parent=1 // pred_fallthru
      _
    %v132 = vld [vmem:[#allocation12] sm:$0x1f]
    %v133 = vld [vmem:[#allocation12 + $0x8] sm:$0x1f]
    %v134 = vld [vmem:[#allocation2] sm:$0xff]
    %v135 = vpack.c.bf16 %v134, %v134
    %v136 = vld [vmem:[#allocation4] sm:$0xff]
    %v137 = vld [vmem:[#allocation4 + $0x8] sm:$0x77]
    %v138 = vperm.slane %v132, 0
    %v139 = vperm.slane %v133, 0
    %v142 = vunpack.c.l.b16 %v136
    %v143 = vunpack.c.h.b16 %v136
    %v144 = vunpack.c.l.b16 %v137
    %v145 = vunpack.c.h.b16 %v137
    %v146 = vpack.c.b16 %v144, %v142
    %v147 = vpack.c.b16 %v145, %v143
    %vm148 = vcmask 105472
    %v150 = vsel %vm148, %v135, 0
    %vm152 = vcmask 1045504
    %vm153 = vcmask 1046528
    %v154 = vsel %vm152, 4294967295, 65535
    %v155 = vsel %vm153, %v154, 0
    %v157 = vand.u32 %v146, %v155
    %v160 = vand.u32 %v147, %v155
    %162 = vmatpush.bf16.msra.mxu0 0
    %163 = vmatpush.bf16.msra.mxu0 0
    %164 = vmatpush.bf16.msra.mxu0 0
    %165 = vmatpush.bf16.msra.mxu0 0
    %166 = vmatpush.bf16.msra.mxu0 0
    %167 = vmatpush.bf16.msra.mxu0 0
    %168 = vmatpush.bf16.msra.mxu0 0
    %169 = vmatpush.bf16.msra.mxu0 %v157
    %170 = vmatmul.bf16.gmra.mxu0 %v150
    %v171 = vpop.f32.mrf.mxu0
    %v172 = vadd.f32 %v138, %v171
    %v173 = vpop.f32.mrf.mxu0
    %174 = vdwg.mxu0
    %175 = vmatpush.bf16.msra.mxu0 0
    %176 = vmatpush.bf16.msra.mxu0 0
    %177 = vmatpush.bf16.msra.mxu0 0
    %178 = vmatpush.bf16.msra.mxu0 0
    %179 = vmatpush.bf16.msra.mxu0 0
    %180 = vmatpush.bf16.msra.mxu0 0
    %181 = vmatpush.bf16.msra.mxu0 0
    %182 = vmatpush.bf16.msra.mxu0 %v160
    %183 = vmatmul.bf16.gmra.mxu0 %v150
    %v184 = vpop.f32.mrf.mxu0
    %v185 = vadd.f32 %v139, %v184
    %v186 = vpop.f32.mrf.mxu0
    %187 = vdwg.mxu0
    %v188 = vmax.f32 %v172, 0.0
    %v189 = vmax.f32 %v185, 0.0
    %v190 = vpack.c.bf16 %v188, %v188
    %v191 = vpack.c.bf16 %v189, %v189
    %v192 = vld [vmem:[#allocation6] sm:$0xff]
    %v193 = vld [vmem:[#allocation6 + $0x8] sm:$0xff]
    %v194 = vld [vmem:[#allocation6 + $0x10] sm:$0xff]
    %v195 = vld [vmem:[#allocation6 + $0x18] sm:$0xff]
    %v196 = vld [vmem:[#allocation6 + $0x20] sm:$0xff]
    %v197 = vld [vmem:[#allocation6 + $0x28] sm:$0xff]
    %v198 = vld [vmem:[#allocation6 + $0x30] sm:$0xff]
    %v199 = vld [vmem:[#allocation6 + $0x38] sm:$0xff]
    %v200 = vld [vmem:[#allocation6 + $0x40] sm:$0xff]
    %v201 = vld [vmem:[#allocation6 + $0x48] sm:$0xff]
    %v202 = vld [vmem:[#allocation6 + $0x50] sm:$0xff]
    %v203 = vld [vmem:[#allocation6 + $0x58] sm:$0xff]
    %v204 = vld [vmem:[#allocation6 + $0x60] sm:$0xff]
    %v205 = vld [vmem:[#allocation6 + $0x68] sm:$0xff]
    %v206 = vld [vmem:[#allocation6 + $0x70] sm:$0xff]
    %v207 = vld [vmem:[#allocation6 + $0x78] sm:$0xff]
    %v208 = vld [vmem:[#allocation6 + $0x80] sm:$0xff]
    %v209 = vld [vmem:[#allocation6 + $0x88] sm:$0xff]
    %v210 = vld [vmem:[#allocation6 + $0x90] sm:$0xff]
    %v211 = vld [vmem:[#allocation6 + $0x98] sm:$0xff]
    %v212 = vld [vmem:[#allocation6 + $0xa0] sm:$0xff]
    %v213 = vld [vmem:[#allocation6 + $0xa8] sm:$0xff]
    %v214 = vld [vmem:[#allocation6 + $0xb0] sm:$0xff]
    %v215 = vld [vmem:[#allocation6 + $0xb8] sm:$0xff]
    %v216 = vld [vmem:[#allocation6 + $0xc0] sm:$0xff]
    %v217 = vld [vmem:[#allocation6 + $0xc8] sm:$0xff]
    %v218 = vld [vmem:[#allocation6 + $0xd0] sm:$0xff]
    %v219 = vld [vmem:[#allocation6 + $0xd8] sm:$0xff]
    %v220 = vld [vmem:[#allocation6 + $0xe0] sm:$0xff]
    %v221 = vld [vmem:[#allocation6 + $0xe8] sm:$0xff]
    %v222 = vld [vmem:[#allocation6 + $0xf0] sm:$0xff]
    %v223 = vld [vmem:[#allocation6 + $0xf8] sm:$0xff]
    %v224 = vperm.slane %v132, 1
    %v225 = vperm.slane %v133, 1
    %v258 = vunpack.c.l.b16 %v192
    %v259 = vunpack.c.h.b16 %v192
    %v260 = vunpack.c.l.b16 %v193
    %v261 = vunpack.c.h.b16 %v193
    %v262 = vunpack.c.l.b16 %v194
    %v263 = vunpack.c.h.b16 %v194
    %v264 = vunpack.c.l.b16 %v195
    %v265 = vunpack.c.h.b16 %v195
    %v266 = vunpack.c.l.b16 %v196
    %v267 = vunpack.c.h.b16 %v196
    %v268 = vunpack.c.l.b16 %v197
    %v269 = vunpack.c.h.b16 %v197
    %v270 = vunpack.c.l.b16 %v198
    %v271 = vunpack.c.h.b16 %v198
    %v272 = vunpack.c.l.b16 %v199
    %v273 = vunpack.c.h.b16 %v199
    %v274 = vunpack.c.l.b16 %v200
    %v275 = vunpack.c.h.b16 %v200
    %v276 = vunpack.c.l.b16 %v201
    %v277 = vunpack.c.h.b16 %v201
    %v278 = vunpack.c.l.b16 %v202
    %v279 = vunpack.c.h.b16 %v202
    %v280 = vunpack.c.l.b16 %v203
    %v281 = vunpack.c.h.b16 %v203
    %v282 = vunpack.c.l.b16 %v204
    %v283 = vunpack.c.h.b16 %v204
    %v284 = vunpack.c.l.b16 %v205
    %v285 = vunpack.c.h.b16 %v205
    %v286 = vunpack.c.l.b16 %v206
    %v287 = vunpack.c.h.b16 %v206
    %v288 = vunpack.c.l.b16 %v207
    %v289 = vunpack.c.h.b16 %v207
    %v290 = vunpack.c.l.b16 %v208
    %v291 = vunpack.c.h.b16 %v208
    %v292 = vunpack.c.l.b16 %v209
    %v293 = vunpack.c.h.b16 %v209
    %v294 = vunpack.c.l.b16 %v210
    %v295 = vunpack.c.h.b16 %v210
    %v296 = vunpack.c.l.b16 %v211
    %v297 = vunpack.c.h.b16 %v211
    %v298 = vunpack.c.l.b16 %v212
    %v299 = vunpack.c.h.b16 %v212
    %v300 = vunpack.c.l.b16 %v213
    %v301 = vunpack.c.h.b16 %v213
    %v302 = vunpack.c.l.b16 %v214
    %v303 = vunpack.c.h.b16 %v214
    %v304 = vunpack.c.l.b16 %v215
    %v305 = vunpack.c.h.b16 %v215
    %v306 = vunpack.c.l.b16 %v216
    %v307 = vunpack.c.h.b16 %v216
    %v308 = vunpack.c.l.b16 %v217
    %v309 = vunpack.c.h.b16 %v217
    %v310 = vunpack.c.l.b16 %v218
    %v311 = vunpack.c.h.b16 %v218
    %v312 = vunpack.c.l.b16 %v219
    %v313 = vunpack.c.h.b16 %v219
    %v314 = vunpack.c.l.b16 %v220
    %v315 = vunpack.c.h.b16 %v220
    %v316 = vunpack.c.l.b16 %v221
    %v317 = vunpack.c.h.b16 %v221
    %v318 = vunpack.c.l.b16 %v222
    %v319 = vunpack.c.h.b16 %v222
    %v320 = vunpack.c.l.b16 %v223
    %v321 = vunpack.c.h.b16 %v223
    %v322 = vpack.c.b16 %v260, %v258
    %v323 = vpack.c.b16 %v261, %v259
    %v324 = vpack.c.b16 %v264, %v262
    %v325 = vpack.c.b16 %v265, %v263
    %v326 = vpack.c.b16 %v268, %v266
    %v327 = vpack.c.b16 %v269, %v267
    %v328 = vpack.c.b16 %v272, %v270
    %v329 = vpack.c.b16 %v273, %v271
    %v330 = vpack.c.b16 %v276, %v274
    %v331 = vpack.c.b16 %v277, %v275
    %v332 = vpack.c.b16 %v280, %v278
    %v333 = vpack.c.b16 %v281, %v279
    %v334 = vpack.c.b16 %v284, %v282
    %v335 = vpack.c.b16 %v285, %v283
    %v336 = vpack.c.b16 %v288, %v286
    %v337 = vpack.c.b16 %v289, %v287
    %v338 = vpack.c.b16 %v292, %v290
    %v339 = vpack.c.b16 %v293, %v291
    %v340 = vpack.c.b16 %v296, %v294
    %v341 = vpack.c.b16 %v297, %v295
    %v342 = vpack.c.b16 %v300, %v298
    %v343 = vpack.c.b16 %v301, %v299
    %v344 = vpack.c.b16 %v304, %v302
    %v345 = vpack.c.b16 %v305, %v303
    %v346 = vpack.c.b16 %v308, %v306
    %v347 = vpack.c.b16 %v309, %v307
    %v348 = vpack.c.b16 %v312, %v310
    %v349 = vpack.c.b16 %v313, %v311
    %v350 = vpack.c.b16 %v316, %v314
    %v351 = vpack.c.b16 %v317, %v315
    %v352 = vpack.c.b16 %v320, %v318
    %v353 = vpack.c.b16 %v321, %v319
    %386 = vmatpush.bf16.msra.mxu0 %v336
    %387 = vmatpush.bf16.msra.mxu0 %v334
    %388 = vmatpush.bf16.msra.mxu0 %v332
    %389 = vmatpush.bf16.msra.mxu0 %v330
    %390 = vmatpush.bf16.msra.mxu0 %v328
    %391 = vmatpush.bf16.msra.mxu0 %v326
    %392 = vmatpush.bf16.msra.mxu0 %v324
    %393 = vmatpush.bf16.msra.mxu0 %v322
    %394 = vmatmul.bf16.gmra.mxu0 %v190
    %v395 = vpop.f32.mrf.mxu0
    %v396 = vadd.f32 %v224, %v395
    %v397 = vpop.f32.mrf.mxu0
    %398 = vdwg.mxu0
    %399 = vmatpush.bf16.msra.mxu0 %v352
    %400 = vmatpush.bf16.msra.mxu0 %v350
    %401 = vmatpush.bf16.msra.mxu0 %v348
    %402 = vmatpush.bf16.msra.mxu0 %v346
    %403 = vmatpush.bf16.msra.mxu0 %v344
    %404 = vmatpush.bf16.msra.mxu0 %v342
    %405 = vmatpush.bf16.msra.mxu0 %v340
    %406 = vmatpush.bf16.msra.mxu0 %v338
    %407 = vmatmul.bf16.gmra.mxu0 %v191
    %v408 = vpop.f32.mrf.mxu0
    %v409 = vadd.f32 %v396, %v408
    %v410 = vpop.f32.mrf.mxu0
    %411 = vdwg.mxu0
    %412 = vmatpush.bf16.msra.mxu0 %v337
    %413 = vmatpush.bf16.msra.mxu0 %v335
    %414 = vmatpush.bf16.msra.mxu0 %v333
    %415 = vmatpush.bf16.msra.mxu0 %v331
    %416 = vmatpush.bf16.msra.mxu0 %v329
    %417 = vmatpush.bf16.msra.mxu0 %v327
    %418 = vmatpush.bf16.msra.mxu0 %v325
    %419 = vmatpush.bf16.msra.mxu0 %v323
    %420 = vmatmul.bf16.gmra.mxu0 %v190
    %v421 = vpop.f32.mrf.mxu0
    %v422 = vadd.f32 %v225, %v421
    %v423 = vpop.f32.mrf.mxu0
    %424 = vdwg.mxu0
    %425 = vmatpush.bf16.msra.mxu0 %v353
    %426 = vmatpush.bf16.msra.mxu0 %v351
    %427 = vmatpush.bf16.msra.mxu0 %v349
    %428 = vmatpush.bf16.msra.mxu0 %v347
    %429 = vmatpush.bf16.msra.mxu0 %v345
    %430 = vmatpush.bf16.msra.mxu0 %v343
    %431 = vmatpush.bf16.msra.mxu0 %v341
    %432 = vmatpush.bf16.msra.mxu0 %v339
    %433 = vmatmul.bf16.gmra.mxu0 %v191
    %v434 = vpop.f32.mrf.mxu0
    %v435 = vadd.f32 %v422, %v434
    %v436 = vpop.f32.mrf.mxu0
    %437 = vdwg.mxu0
    %v438 = vmax.f32 %v409, 0.0
    %v439 = vmax.f32 %v435, 0.0
    %v440 = vpack.c.bf16 %v438, %v438
    %v441 = vpack.c.bf16 %v439, %v439
    %v442 = vld [vmem:[#allocation7] sm:$0xff]
    %v443 = vld [vmem:[#allocation7 + $0x8] sm:$0xff]
    %v444 = vld [vmem:[#allocation7 + $0x10] sm:$0xff]
    %v445 = vld [vmem:[#allocation7 + $0x18] sm:$0xff]
    %v446 = vld [vmem:[#allocation7 + $0x20] sm:$0xff]
    %v447 = vld [vmem:[#allocation7 + $0x28] sm:$0xff]
    %v448 = vld [vmem:[#allocation7 + $0x30] sm:$0xff]
    %v449 = vld [vmem:[#allocation7 + $0x38] sm:$0xff]
    %v450 = vld [vmem:[#allocation7 + $0x40] sm:$0xff]
    %v451 = vld [vmem:[#allocation7 + $0x48] sm:$0xff]
    %v452 = vld [vmem:[#allocation7 + $0x50] sm:$0xff]
    %v453 = vld [vmem:[#allocation7 + $0x58] sm:$0xff]
    %v454 = vld [vmem:[#allocation7 + $0x60] sm:$0xff]
    %v455 = vld [vmem:[#allocation7 + $0x68] sm:$0xff]
    %v456 = vld [vmem:[#allocation7 + $0x70] sm:$0xff]
    %v457 = vld [vmem:[#allocation7 + $0x78] sm:$0xff]
    %v458 = vld [vmem:[#allocation7 + $0x80] sm:$0xff]
    %v459 = vld [vmem:[#allocation7 + $0x88] sm:$0xff]
    %v460 = vld [vmem:[#allocation7 + $0x90] sm:$0xff]
    %v461 = vld [vmem:[#allocation7 + $0x98] sm:$0xff]
    %v462 = vld [vmem:[#allocation7 + $0xa0] sm:$0xff]
    %v463 = vld [vmem:[#allocation7 + $0xa8] sm:$0xff]
    %v464 = vld [vmem:[#allocation7 + $0xb0] sm:$0xff]
    %v465 = vld [vmem:[#allocation7 + $0xb8] sm:$0xff]
    %v466 = vld [vmem:[#allocation7 + $0xc0] sm:$0xff]
    %v467 = vld [vmem:[#allocation7 + $0xc8] sm:$0xff]
    %v468 = vld [vmem:[#allocation7 + $0xd0] sm:$0xff]
    %v469 = vld [vmem:[#allocation7 + $0xd8] sm:$0xff]
    %v470 = vld [vmem:[#allocation7 + $0xe0] sm:$0xff]
    %v471 = vld [vmem:[#allocation7 + $0xe8] sm:$0xff]
    %v472 = vld [vmem:[#allocation7 + $0xf0] sm:$0xff]
    %v473 = vld [vmem:[#allocation7 + $0xf8] sm:$0xff]
    %v474 = vperm.slane %v132, 2
    %v475 = vperm.slane %v133, 2
    %v508 = vunpack.c.l.b16 %v442
    %v509 = vunpack.c.h.b16 %v442
    %v510 = vunpack.c.l.b16 %v443
    %v511 = vunpack.c.h.b16 %v443
    %v512 = vunpack.c.l.b16 %v444
    %v513 = vunpack.c.h.b16 %v444
    %v514 = vunpack.c.l.b16 %v445
    %v515 = vunpack.c.h.b16 %v445
    %v516 = vunpack.c.l.b16 %v446
    %v517 = vunpack.c.h.b16 %v446
    %v518 = vunpack.c.l.b16 %v447
    %v519 = vunpack.c.h.b16 %v447
    %v520 = vunpack.c.l.b16 %v448
    %v521 = vunpack.c.h.b16 %v448
    %v522 = vunpack.c.l.b16 %v449
    %v523 = vunpack.c.h.b16 %v449
    %v524 = vunpack.c.l.b16 %v450
    %v525 = vunpack.c.h.b16 %v450
    %v526 = vunpack.c.l.b16 %v451
    %v527 = vunpack.c.h.b16 %v451
    %v528 = vunpack.c.l.b16 %v452
    %v529 = vunpack.c.h.b16 %v452
    %v530 = vunpack.c.l.b16 %v453
    %v531 = vunpack.c.h.b16 %v453
    %v532 = vunpack.c.l.b16 %v454
    %v533 = vunpack.c.h.b16 %v454
    %v534 = vunpack.c.l.b16 %v455
    %v535 = vunpack.c.h.b16 %v455
    %v536 = vunpack.c.l.b16 %v456
    %v537 = vunpack.c.h.b16 %v456
    %v538 = vunpack.c.l.b16 %v457
    %v539 = vunpack.c.h.b16 %v457
    %v540 = vunpack.c.l.b16 %v458
    %v541 = vunpack.c.h.b16 %v458
    %v542 = vunpack.c.l.b16 %v459
    %v543 = vunpack.c.h.b16 %v459
    %v544 = vunpack.c.l.b16 %v460
    %v545 = vunpack.c.h.b16 %v460
    %v546 = vunpack.c.l.b16 %v461
    %v547 = vunpack.c.h.b16 %v461
    %v548 = vunpack.c.l.b16 %v462
    %v549 = vunpack.c.h.b16 %v462
    %v550 = vunpack.c.l.b16 %v463
    %v551 = vunpack.c.h.b16 %v463
    %v552 = vunpack.c.l.b16 %v464
    %v553 = vunpack.c.h.b16 %v464
    %v554 = vunpack.c.l.b16 %v465
    %v555 = vunpack.c.h.b16 %v465
    %v556 = vunpack.c.l.b16 %v466
    %v557 = vunpack.c.h.b16 %v466
    %v558 = vunpack.c.l.b16 %v467
    %v559 = vunpack.c.h.b16 %v467
    %v560 = vunpack.c.l.b16 %v468
    %v561 = vunpack.c.h.b16 %v468
    %v562 = vunpack.c.l.b16 %v469
    %v563 = vunpack.c.h.b16 %v469
    %v564 = vunpack.c.l.b16 %v470
    %v565 = vunpack.c.h.b16 %v470
    %v566 = vunpack.c.l.b16 %v471
    %v567 = vunpack.c.h.b16 %v471
    %v568 = vunpack.c.l.b16 %v472
    %v569 = vunpack.c.h.b16 %v472
    %v570 = vunpack.c.l.b16 %v473
    %v571 = vunpack.c.h.b16 %v473
    %v572 = vpack.c.b16 %v510, %v508
    %v573 = vpack.c.b16 %v511, %v509
    %v574 = vpack.c.b16 %v514, %v512
    %v575 = vpack.c.b16 %v515, %v513
    %v576 = vpack.c.b16 %v518, %v516
    %v577 = vpack.c.b16 %v519, %v517
    %v578 = vpack.c.b16 %v522, %v520
    %v579 = vpack.c.b16 %v523, %v521
    %v580 = vpack.c.b16 %v526, %v524
    %v581 = vpack.c.b16 %v527, %v525
    %v582 = vpack.c.b16 %v530, %v528
    %v583 = vpack.c.b16 %v531, %v529
    %v584 = vpack.c.b16 %v534, %v532
    %v585 = vpack.c.b16 %v535, %v533
    %v586 = vpack.c.b16 %v538, %v536
    %v587 = vpack.c.b16 %v539, %v537
    %v588 = vpack.c.b16 %v542, %v540
    %v589 = vpack.c.b16 %v543, %v541
    %v590 = vpack.c.b16 %v546, %v544
    %v591 = vpack.c.b16 %v547, %v545
    %v592 = vpack.c.b16 %v550, %v548
    %v593 = vpack.c.b16 %v551, %v549
    %v594 = vpack.c.b16 %v554, %v552
    %v595 = vpack.c.b16 %v555, %v553
    %v596 = vpack.c.b16 %v558, %v556
    %v597 = vpack.c.b16 %v559, %v557
    %v598 = vpack.c.b16 %v562, %v560
    %v599 = vpack.c.b16 %v563, %v561
    %v600 = vpack.c.b16 %v566, %v564
    %v601 = vpack.c.b16 %v567, %v565
    %v602 = vpack.c.b16 %v570, %v568
    %v603 = vpack.c.b16 %v571, %v569
    %636 = vmatpush.bf16.msra.mxu0 %v586
    %637 = vmatpush.bf16.msra.mxu0 %v584
    %638 = vmatpush.bf16.msra.mxu0 %v582
    %639 = vmatpush.bf16.msra.mxu0 %v580
    %640 = vmatpush.bf16.msra.mxu0 %v578
    %641 = vmatpush.bf16.msra.mxu0 %v576
    %642 = vmatpush.bf16.msra.mxu0 %v574
    %643 = vmatpush.bf16.msra.mxu0 %v572
    %644 = vmatmul.bf16.gmra.mxu0 %v440
    %v645 = vpop.f32.mrf.mxu0
    %v646 = vadd.f32 %v474, %v645
    %v647 = vpop.f32.mrf.mxu0
    %648 = vdwg.mxu0
    %649 = vmatpush.bf16.msra.mxu0 %v602
    %650 = vmatpush.bf16.msra.mxu0 %v600
    %651 = vmatpush.bf16.msra.mxu0 %v598
    %652 = vmatpush.bf16.msra.mxu0 %v596
    %653 = vmatpush.bf16.msra.mxu0 %v594
    %654 = vmatpush.bf16.msra.mxu0 %v592
    %655 = vmatpush.bf16.msra.mxu0 %v590
    %656 = vmatpush.bf16.msra.mxu0 %v588
    %657 = vmatmul.bf16.gmra.mxu0 %v441
    %v658 = vpop.f32.mrf.mxu0
    %v659 = vadd.f32 %v646, %v658
    %v660 = vpop.f32.mrf.mxu0
    %661 = vdwg.mxu0
    %662 = vmatpush.bf16.msra.mxu0 %v587
    %663 = vmatpush.bf16.msra.mxu0 %v585
    %664 = vmatpush.bf16.msra.mxu0 %v583
    %665 = vmatpush.bf16.msra.mxu0 %v581
    %666 = vmatpush.bf16.msra.mxu0 %v579
    %667 = vmatpush.bf16.msra.mxu0 %v577
    %668 = vmatpush.bf16.msra.mxu0 %v575
    %669 = vmatpush.bf16.msra.mxu0 %v573
    %670 = vmatmul.bf16.gmra.mxu0 %v440
    %v671 = vpop.f32.mrf.mxu0
    %v672 = vadd.f32 %v475, %v671
    %v673 = vpop.f32.mrf.mxu0
    %674 = vdwg.mxu0
    %675 = vmatpush.bf16.msra.mxu0 %v603
    %676 = vmatpush.bf16.msra.mxu0 %v601
    %677 = vmatpush.bf16.msra.mxu0 %v599
    %678 = vmatpush.bf16.msra.mxu0 %v597
    %679 = vmatpush.bf16.msra.mxu0 %v595
    %680 = vmatpush.bf16.msra.mxu0 %v593
    %681 = vmatpush.bf16.msra.mxu0 %v591
    %682 = vmatpush.bf16.msra.mxu0 %v589
    %683 = vmatmul.bf16.gmra.mxu0 %v441
    %v684 = vpop.f32.mrf.mxu0
    %v685 = vadd.f32 %v672, %v684
    %v686 = vpop.f32.mrf.mxu0
    %687 = vdwg.mxu0
    %v688 = vmax.f32 %v659, 0.0
    %v689 = vmax.f32 %v685, 0.0
    %v690 = vpack.c.bf16 %v688, %v688
    %v691 = vpack.c.bf16 %v689, %v689
    %v692 = vld [vmem:[#allocation9] sm:$0xf]
    %v693 = vld [vmem:[#allocation9 + $0x4] sm:$0xf]
    %v694 = vld [vmem:[#allocation9 + $0x8] sm:$0xf]
    %v695 = vld [vmem:[#allocation9 + $0xc] sm:$0xf]
    %v696 = vld [vmem:[#allocation9 + $0x10] sm:$0xf]
    %v697 = vld [vmem:[#allocation9 + $0x14] sm:$0xf]
    %v698 = vld [vmem:[#allocation9 + $0x18] sm:$0xf]
    %v699 = vld [vmem:[#allocation9 + $0x1c] sm:$0xf]
    %v700 = vld [vmem:[#allocation9 + $0x20] sm:$0xf]
    %v701 = vld [vmem:[#allocation9 + $0x24] sm:$0xf]
    %v702 = vld [vmem:[#allocation9 + $0x28] sm:$0xf]
    %v703 = vld [vmem:[#allocation9 + $0x2c] sm:$0xf]
    %v704 = vld [vmem:[#allocation9 + $0x30] sm:$0xf]
    %v705 = vld [vmem:[#allocation9 + $0x34] sm:$0xf]
    %v706 = vld [vmem:[#allocation9 + $0x38] sm:$0xf]
    %v707 = vld [vmem:[#allocation9 + $0x3c] sm:$0xf]
    %v708 = vld [vmem:[#allocation9 + $0x40] sm:$0xf]
    %v709 = vld [vmem:[#allocation9 + $0x44] sm:$0xf]
    %v710 = vld [vmem:[#allocation9 + $0x48] sm:$0xf]
    %v711 = vld [vmem:[#allocation9 + $0x4c] sm:$0xf]
    %v712 = vld [vmem:[#allocation9 + $0x50] sm:$0xf]
    %v713 = vld [vmem:[#allocation9 + $0x54] sm:$0xf]
    %v714 = vld [vmem:[#allocation9 + $0x58] sm:$0xf]
    %v715 = vld [vmem:[#allocation9 + $0x5c] sm:$0xf]
    %v716 = vld [vmem:[#allocation9 + $0x60] sm:$0xf]
    %v717 = vld [vmem:[#allocation9 + $0x64] sm:$0xf]
    %v718 = vld [vmem:[#allocation9 + $0x68] sm:$0xf]
    %v719 = vld [vmem:[#allocation9 + $0x6c] sm:$0xf]
    %v720 = vld [vmem:[#allocation9 + $0x70] sm:$0xf]
    %v721 = vld [vmem:[#allocation9 + $0x74] sm:$0xf]
    %v722 = vld [vmem:[#allocation9 + $0x78] sm:$0xf]
    %v723 = vld [vmem:[#allocation9 + $0x7c] sm:$0xf]
    %v724 = vperm.slane %v132, 3
    %v757 = vunpack.c.l.b16 %v692
    %v758 = vunpack.c.l.b16 %v693
    %v759 = vunpack.c.l.b16 %v694
    %v760 = vunpack.c.l.b16 %v695
    %v761 = vunpack.c.l.b16 %v696
    %v762 = vunpack.c.l.b16 %v697
    %v763 = vunpack.c.l.b16 %v698
    %v764 = vunpack.c.l.b16 %v699
    %v765 = vunpack.c.l.b16 %v700
    %v766 = vunpack.c.l.b16 %v701
    %v767 = vunpack.c.l.b16 %v702
    %v768 = vunpack.c.l.b16 %v703
    %v769 = vunpack.c.l.b16 %v704
    %v770 = vunpack.c.l.b16 %v705
    %v771 = vunpack.c.l.b16 %v706
    %v772 = vunpack.c.l.b16 %v707
    %v773 = vunpack.c.l.b16 %v708
    %v774 = vunpack.c.l.b16 %v709
    %v775 = vunpack.c.l.b16 %v710
    %v776 = vunpack.c.l.b16 %v711
    %v777 = vunpack.c.l.b16 %v712
    %v778 = vunpack.c.l.b16 %v713
    %v779 = vunpack.c.l.b16 %v714
    %v780 = vunpack.c.l.b16 %v715
    %v781 = vunpack.c.l.b16 %v716
    %v782 = vunpack.c.l.b16 %v717
    %v783 = vunpack.c.l.b16 %v718
    %v784 = vunpack.c.l.b16 %v719
    %v785 = vunpack.c.l.b16 %v720
    %v786 = vunpack.c.l.b16 %v721
    %v787 = vunpack.c.l.b16 %v722
    %v788 = vunpack.c.l.b16 %v723
    %v789 = vpack.c.b16 %v758, %v757
    %v790 = vpack.c.b16 %v760, %v759
    %v791 = vpack.c.b16 %v762, %v761
    %v792 = vpack.c.b16 %v764, %v763
    %v793 = vpack.c.b16 %v766, %v765
    %v794 = vpack.c.b16 %v768, %v767
    %v795 = vpack.c.b16 %v770, %v769
    %v796 = vpack.c.b16 %v772, %v771
    %v797 = vpack.c.b16 %v774, %v773
    %v798 = vpack.c.b16 %v776, %v775
    %v799 = vpack.c.b16 %v778, %v777
    %v800 = vpack.c.b16 %v780, %v779
    %v801 = vpack.c.b16 %v782, %v781
    %v802 = vpack.c.b16 %v784, %v783
    %v803 = vpack.c.b16 %v786, %v785
    %v804 = vpack.c.b16 %v788, %v787
    %821 = vmatpush.bf16.msra.mxu0 %v796
    %822 = vmatpush.bf16.msra.mxu0 %v795
    %823 = vmatpush.bf16.msra.mxu0 %v794
    %824 = vmatpush.bf16.msra.mxu0 %v793
    %825 = vmatpush.bf16.msra.mxu0 %v792
    %826 = vmatpush.bf16.msra.mxu0 %v791
    %827 = vmatpush.bf16.msra.mxu0 %v790
    %828 = vmatpush.bf16.msra.mxu0 %v789
    %829 = vmatmul.bf16.gmra.mxu0 %v690
    %v830 = vpop.f32.mrf.mxu0
    %v831 = vadd.f32 %v724, %v830
    %v832 = vpop.f32.mrf.mxu0
    %833 = vdwg.mxu0
    %834 = vmatpush.bf16.msra.mxu0 %v804
    %835 = vmatpush.bf16.msra.mxu0 %v803
    %836 = vmatpush.bf16.msra.mxu0 %v802
    %837 = vmatpush.bf16.msra.mxu0 %v801
    %838 = vmatpush.bf16.msra.mxu0 %v800
    %839 = vmatpush.bf16.msra.mxu0 %v799
    %840 = vmatpush.bf16.msra.mxu0 %v798
    %841 = vmatpush.bf16.msra.mxu0 %v797
    %842 = vmatmul.bf16.gmra.mxu0 %v691
    %v843 = vpop.f32.mrf.mxu0
    %v844 = vadd.f32 %v831, %v843
    %v845 = vpop.f32.mrf.mxu0
    %846 = vdwg.mxu0
    %v847 = vmax.f32 %v844, 0.0
    %v848 = vpack.c.bf16 %v847, %v847
    %v849 = vld [vmem:[#allocation10] sm:$0xf]
    %v850 = vld [vmem:[#allocation10 + $0x4] sm:$0xf]
    %v851 = vld [vmem:[#allocation10 + $0x8] sm:$0xf]
    %v852 = vld [vmem:[#allocation10 + $0xc] sm:$0xf]
    %v853 = vld [vmem:[#allocation10 + $0x10] sm:$0xf]
    %v854 = vld [vmem:[#allocation10 + $0x14] sm:$0xf]
    %v855 = vld [vmem:[#allocation10 + $0x18] sm:$0xf]
    %v856 = vld [vmem:[#allocation10 + $0x1c] sm:$0xf]
    %v857 = vld [vmem:[#allocation10 + $0x20] sm:$0xf]
    %v858 = vld [vmem:[#allocation10 + $0x24] sm:$0xf]
    %v859 = vld [vmem:[#allocation10 + $0x28] sm:$0xf]
    %v860 = vld [vmem:[#allocation10 + $0x2c] sm:$0xf]
    %v861 = vld [vmem:[#allocation10 + $0x30] sm:$0xf]
    %v862 = vld [vmem:[#allocation10 + $0x34] sm:$0xf]
    %v863 = vld [vmem:[#allocation10 + $0x38] sm:$0xf]
    %v864 = vld [vmem:[#allocation10 + $0x3c] sm:$0xf]
    %v865 = vperm.slane %v132, 4
    %v882 = vunpack.c.l.b16 %v849
    %v883 = vunpack.c.l.b16 %v850
    %v884 = vunpack.c.l.b16 %v851
    %v885 = vunpack.c.l.b16 %v852
    %v886 = vunpack.c.l.b16 %v853
    %v887 = vunpack.c.l.b16 %v854
    %v888 = vunpack.c.l.b16 %v855
    %v889 = vunpack.c.l.b16 %v856
    %v890 = vunpack.c.l.b16 %v857
    %v891 = vunpack.c.l.b16 %v858
    %v892 = vunpack.c.l.b16 %v859
    %v893 = vunpack.c.l.b16 %v860
    %v894 = vunpack.c.l.b16 %v861
    %v895 = vunpack.c.l.b16 %v862
    %v896 = vunpack.c.l.b16 %v863
    %v897 = vunpack.c.l.b16 %v864
    %v898 = vpack.c.b16 %v883, %v882
    %v899 = vpack.c.b16 %v885, %v884
    %v900 = vpack.c.b16 %v887, %v886
    %v901 = vpack.c.b16 %v889, %v888
    %v902 = vpack.c.b16 %v891, %v890
    %v903 = vpack.c.b16 %v893, %v892
    %v904 = vpack.c.b16 %v895, %v894
    %v905 = vpack.c.b16 %v897, %v896
    %914 = vmatpush.bf16.msra.mxu0 %v905
    %915 = vmatpush.bf16.msra.mxu0 %v904
    %916 = vmatpush.bf16.msra.mxu0 %v903
    %917 = vmatpush.bf16.msra.mxu0 %v902
    %918 = vmatpush.bf16.msra.mxu0 %v901
    %919 = vmatpush.bf16.msra.mxu0 %v900
    %920 = vmatpush.bf16.msra.mxu0 %v899
    %921 = vmatpush.bf16.msra.mxu0 %v898
    %922 = vmatmul.bf16.gmra.mxu0 %v848
    %v923 = vpop.f32.mrf.mxu0
    %v924 = vadd.f32 %v865, %v923
    %v925 = vpop.f32.mrf.mxu0
    %926 = vdwg.mxu0
    %vm927 = vcmask 15360
    %928 = vst.msk [vmem:[%s7] sm:$0xff] %vm927, %v924
    // Predicated region
    $region58: #{tpu_custom_call.1} parent=1 // pred_check
      _
    $region59: #{tpu_custom_call.1} parent=1 // pred_check_branch
      %930 = sbr.rel (0) target = $region61
    $region60: #{tpu_custom_call.1} parent=1 // pred_region
      _
    $region61: #{tpu_custom_call.1} parent=1 // pred_fallthru
      _
    // Predicated region
    $region62: #{tpu_custom_call.1} parent=1 // pred_check
      _
    $region63: #{tpu_custom_call.1} parent=1 // pred_check_branch
      %932 = sbr.rel (0) target = $region65
    $region64: #{tpu_custom_call.1} parent=1 // pred_region
      _
    $region65: #{tpu_custom_call.1} parent=1 // pred_fallthru
      _
    %933 = vsyncpa [#allocation3], 1
    %934 = vsyncpa [#allocation5], 1
    %935 = vsyncpa [#allocation8], 1
    %936 = vsyncpa [#allocation11], 1

</llo_original>
